<compile_context>
chip_gen: v7x
topology: tpu7x:2x2x1
jax: 0.10.0
libtpu: 0.0.40
codegen_flags: <defaults>
</compile_context>

<pallas_src>
import functools

import jax
import jax.numpy as jnp
from jax.experimental import pallas as pl
from jax.experimental.pallas import tpu as pltpu


def _adv_ce_tile_kernel(x_ref, t_ref, o_ref, *, tile_n, n_rows):
    """Writes sum over the tile's valid rows of (logsumexp(x_row) - x_row[target])."""
    i = pl.program_id(0)
    x = x_ref[...]                                    # (tile_n, C), input dtype
    t = t_ref[...]                                    # (tile_n, 1) int32

    # Row-validity mask for the (possibly padded) last tile.
    row = jax.lax.broadcasted_iota(jnp.int32, (tile_n, 1), 0) + i * tile_n
    valid = row < n_rows                              # (tile_n, 1) bool

    # Numerically-stable per-row cross entropy, with the target extraction fused
    # into the same shifted pass:  lse - x[t] = log(sum(exp(x - m))) - (x[t] - m)
    # (the row max m cancels, saving one full-lane reduction).
    m = jnp.max(x, axis=-1, keepdims=True)            # (tile_n, 1), input dtype (VPU)
    xm = (x - m).astype(jnp.float32)                  # upcast only the shifted values

    col = jax.lax.broadcasted_iota(jnp.int32, x.shape, 1)
    tgt_shift = jnp.sum(jnp.where(col == t, xm, 0.0), axis=-1, keepdims=True)

    # TODO(synk): on v7x, if EUP-exp saturates at 3.2 TB/s HBM, run exp in bf16 here.
    sum_exp = jnp.sum(jnp.exp(xm), axis=-1, keepdims=True)
    per_row = jnp.log(sum_exp) - tgt_shift            # (tile_n, 1) f32

    per_row = jnp.where(valid, per_row, 0.0)          # drop padded rows
    o_ref[0, 0] = jnp.sum(per_row)


def adv_finetune_loss(output, target, *, tile_n=None,
                      vmem_limit_bytes=48 * 1024 * 1024):
    """output: (N, C) float logits; target: (N,) int class indices.
    Returns scalar f32 = -mean(cross_entropy(output, target))."""
    n, c = output.shape
    itemsize = jnp.dtype(output.dtype).itemsize

    if tile_n is None:
        # Size the row tile so that (double-buffered input tile + f32 temporaries)
        # stays comfortably inside the scoped VMEM budget on every generation
        # (v7x has only 64 MiB physical VMEM, so stay well under half of that).
        per_row_bytes = c * (itemsize + 4) + 8        # logits tile + f32 temp + target
        budget = 8 * 1024 * 1024                      # per live tile
        tile_n = max(8, min(512, budget // max(per_row_bytes, 1)))
        tile_n = max(8, (tile_n // 8) * 8)            # sublane-aligned
    # Never make the tile larger than the (8-row aligned) problem size.
    tile_n = min(tile_n, max(8, ((n + 7) // 8) * 8))
    num_tiles = pl.cdiv(n, tile_n)

    t2d = target.astype(jnp.int32).reshape(n, 1)
    kernel = functools.partial(_adv_ce_tile_kernel, tile_n=tile_n, n_rows=n)

    partial_sums = pl.pallas_call(
        kernel,
        out_shape=jax.ShapeDtypeStruct((num_tiles, 1), jnp.float32),
        grid=(num_tiles,),
        in_specs=[
            pl.BlockSpec((tile_n, c), lambda i: (i, 0)),   # logits tile (VMEM, pipelined)
            pl.BlockSpec((tile_n, 1), lambda i: (i, 0)),   # target tile
        ],
        out_specs=pl.BlockSpec((1, 1), lambda i: (i, 0), memory_space=pltpu.SMEM),
        compiler_params=pltpu.CompilerParams(
            dimension_semantics=("parallel",),             # megacore-friendly on v7x
            vmem_limit_bytes=vmem_limit_bytes,
        ),
        cost_estimate=pl.CostEstimate(
            flops=5 * n * c,
            transcendentals=n * c,
            bytes_accessed=n * c * itemsize + n * 4 + num_tiles * 4,
        ),
    )(output, t2d)

    # mean over the TRUE number of rows, then gradient-ascent sign flip.
    return -(jnp.sum(partial_sums) / n)


def _reference(output, target):
    # pure-JAX reference of -CrossEntropyLoss (mean reduction)
    logits = output.astype(jnp.float32)
    lse = jax.scipy.special.logsumexp(logits, axis=-1)
    tgt = jnp.take_along_axis(logits, target[:, None].astype(jnp.int32), axis=-1)[:, 0]
    return -jnp.mean(lse - tgt)


if __name__ == "__main__":
    key = jax.random.PRNGKey(0)

    # Test 1: small f32, tile divides N exactly.
    k1, k2, k3, k4 = jax.random.split(key, 4)
    N1, C1 = 8, 32
    out1 = jax.random.normal(k1, (N1, C1), dtype=jnp.float32)
    tgt1 = jax.random.randint(k2, (N1,), 0, C1, dtype=jnp.int32)
    loss1 = adv_finetune_loss(out1, tgt1)
    jax.block_until_ready(loss1)
    ref1 = _reference(out1, tgt1)
    assert jnp.allclose(loss1, ref1, atol=1e-5, rtol=1e-5), (loss1, ref1)

    # Test 2: f32, N not a multiple of the tile -> exercises padded-row masking.
    N2, C2 = 20, 48
    out2 = jax.random.normal(k3, (N2, C2), dtype=jnp.float32)
    tgt2 = jax.random.randint(k4, (N2,), 0, C2, dtype=jnp.int32)
    loss2 = adv_finetune_loss(out2, tgt2)
    jax.block_until_ready(loss2)
    ref2 = _reference(out2, tgt2)
    assert jnp.allclose(loss2, ref2, atol=1e-5, rtol=1e-5), (loss2, ref2)

    # Test 3: bf16 logits -> exercises the no-f32-materialization path.
    out3 = out2.astype(jnp.bfloat16)
    loss3 = adv_finetune_loss(out3, tgt2)
    jax.block_until_ready(loss3)
    ref3 = _reference(out3, tgt2)
    assert jnp.allclose(loss3, ref3, atol=1e-1, rtol=1e-2), (loss3, ref3)

    print("KERNEL_OK")
</pallas_src>

<mosaic_0001>
module attributes {stable_mosaic.version = 11 : i64} {
  func.func @_adv_ce_tile_kernel(%arg0: i32, %arg1: memref<8x32xf32, #tpu.memory_space<vmem>>, %arg2: memref<8x1xi32, #tpu.memory_space<vmem>>, %arg3: memref<1x1xf32, #tpu.memory_space<smem>>) attributes {dimension_semantics = [#tpu.dimension_semantics<parallel>], iteration_bounds = array<i64: 1>, scalar_prefetch = 0 : i64, scratch_operands = 0 : i64, tpu.core_type = #tpu.core_type<tc>, window_params = [{transform_indices = @transform_0, window_bounds = array<i64: 8, 32>}, {transform_indices = @transform_1, window_bounds = array<i64: 8, 1>}, {transform_indices = @transform_2, window_bounds = array<i64: 1, 1>}]} {
    %c0 = arith.constant 0 : index
    %c0_0 = arith.constant 0 : index
    %0 = vector.load %arg1[%c0, %c0_0] : memref<8x32xf32, #tpu.memory_space<vmem>>, vector<8x32xf32>
    %c0_1 = arith.constant 0 : index
    %c0_2 = arith.constant 0 : index
    %1 = vector.load %arg2[%c0_1, %c0_2] : memref<8x1xi32, #tpu.memory_space<vmem>>, vector<8x1xi32>
    %2 = tpu.iota {dimensions = array<i32: 0>} : vector<8x1xi32>
    %c8_i32 = arith.constant 8 : i32
    %3 = arith.muli %arg0, %c8_i32 : i32
    %4 = vector.broadcast %3 : i32 to vector<8x1xi32>
    %5 = arith.addi %2, %4 : vector<8x1xi32>
    %c8_i32_3 = arith.constant 8 : i32
    %6 = vector.broadcast %c8_i32_3 : i32 to vector<8x1xi32>
    %7 = arith.cmpi slt, %5, %6 : vector<8x1xi32>
    %cst = arith.constant dense<0xFF800000> : vector<8xf32>
    %8 = vector.multi_reduction <maximumf>, %0, %cst [1] : vector<8x32xf32> to vector<8xf32>
    %9 = vector.shape_cast %8 : vector<8xf32> to vector<8x1xf32>
    %10 = vector.broadcast %9 : vector<8x1xf32> to vector<8x32xf32>
    %11 = arith.subf %0, %10 : vector<8x32xf32>
    %12 = tpu.iota {dimensions = array<i32: 1>} : vector<8x32xi32>
    %13 = vector.broadcast %1 : vector<8x1xi32> to vector<8x32xi32>
    %14 = arith.cmpi eq, %12, %13 : vector<8x32xi32>
    %cst_4 = arith.constant 0.000000e+00 : f32
    %15 = vector.broadcast %cst_4 : f32 to vector<8x32xf32>
    %16 = arith.select %14, %11, %15 : vector<8x32xi1>, vector<8x32xf32>
    %cst_5 = arith.constant dense<0.000000e+00> : vector<8xf32>
    %17 = vector.multi_reduction <add>, %16, %cst_5 [1] : vector<8x32xf32> to vector<8xf32>
    %18 = vector.shape_cast %17 : vector<8xf32> to vector<8x1xf32>
    %19 = math.exp %11 : vector<8x32xf32>
    %cst_6 = arith.constant dense<0.000000e+00> : vector<8xf32>
    %20 = vector.multi_reduction <add>, %19, %cst_6 [1] : vector<8x32xf32> to vector<8xf32>
    %21 = vector.shape_cast %20 : vector<8xf32> to vector<8x1xf32>
    %22 = math.log %21 : vector<8x1xf32>
    %23 = arith.subf %22, %18 : vector<8x1xf32>
    %cst_7 = arith.constant 0.000000e+00 : f32
    %24 = vector.broadcast %cst_7 : f32 to vector<8x1xf32>
    %25 = arith.select %7, %23, %24 : vector<8x1xi1>, vector<8x1xf32>
    %26 = vector.shape_cast %25 : vector<8x1xf32> to vector<1x8x1xf32>
    %cst_8 = arith.constant dense<0.000000e+00> : vector<1xf32>
    %27 = vector.multi_reduction <add>, %26, %cst_8 [1, 2] : vector<1x8x1xf32> to vector<1xf32>
    %28 = vector.shape_cast %27 : vector<1xf32> to vector<1x1x1xf32>
    %29 = vector.extract %28[0, 0, 0] : f32 from vector<1x1x1xf32>
    %c0_9 = arith.constant 0 : index
    %c0_10 = arith.constant 0 : index
    %30 = memref.load %arg3[%c0_9, %c0_10] : memref<1x1xf32, #tpu.memory_space<smem>>
    memref.store %29, %arg3[%c0_9, %c0_10] : memref<1x1xf32, #tpu.memory_space<smem>>
    return
  }
  func.func @transform_0(%arg0: i32) -> (i32, i32) {
    %c0_i32 = arith.constant 0 : i32
    %c0_i32_0 = arith.constant 0 : i32
    return %arg0, %c0_i32 : i32, i32
  }
  func.func @transform_1(%arg0: i32) -> (i32, i32) {
    %c0_i32 = arith.constant 0 : i32
    %c0_i32_0 = arith.constant 0 : i32
    return %arg0, %c0_i32 : i32, i32
  }
  func.func @transform_2(%arg0: i32) -> (i32, i32) {
    %c0_i32 = arith.constant 0 : i32
    %c0_i32_0 = arith.constant 0 : i32
    return %arg0, %c0_i32 : i32, i32
  }
}

</mosaic_0001>

<llo_original>
// kernel: tpu_custom_call.1
$region0: #{tpu_custom_call.1}
  #allocation0 [shape = 'u32[]', space=smem, size = 0x4, offset = 0x4, fixed_abs, tag = 'smem constant byte address 0x4 - core index']
  #allocation1 [shape = 'u32[144,128]{1,0:T(1,128)}', space=vmem, size = 0x12000, scoped, tag = 'internal scratch']
  %s0 = inlined_call_operand.vmem [shape: f32[8,32], index: 0, kind: input, shape index: {}]
  %s1 = inlined_call_operand.vmem [shape: s32[8,1], index: 1, kind: input, shape index: {}]
  %s2 = inlined_call_operand.hbm [shape: f32[1,1], index: 2, kind: output, shape index: {}]
  %s3 = sld [smem:[#allocation0]]
  $region18: #{tpu_custom_call.1} parent=0
    _
  %s5 = ssub.s32 1, %s3
  %s6 = scalar_select 0, %s5, %s3
  $region1: #{tpu_custom_call.1} parent=0
    #allocation2 [shape = 'u8[512]{0}', space=smem, size = 0x200, scoped, tag = 'output window, operand 0, single buffered']
    #allocation3 [shape = 's32[1]{0}', space=sflag, size = 0x4, scoped, tag = 'scoped memory for tpu_custom_call.1']
    %7 = vsyncpa [#allocation3], 0
    // Predicated region
    $region2: #{tpu_custom_call.1} parent=1 // pred_check
      _
    $region3: #{tpu_custom_call.1} parent=1 // pred_check_branch
      %9 = sbr.rel (0) target = $region5
    $region4: #{tpu_custom_call.1} parent=1 // pred_region
      _
    $region5: #{tpu_custom_call.1} parent=1 // pred_fallthru
      _
    // Predicated region
    $region6: #{tpu_custom_call.1} parent=1 // pred_check
      _
    $region7: #{tpu_custom_call.1} parent=1 // pred_check_branch
      %11 = sbr.rel (0) target = $region9
    $region8: #{tpu_custom_call.1} parent=1 // pred_region
      _
    $region9: #{tpu_custom_call.1} parent=1 // pred_fallthru
      _
    %v12 = vld [vmem:[%s0] sm:$0xff]
    %v13 = vld [vmem:[%s1] sm:$0xff]
    %v14 = vlaneseq
    %v15 = vshrl.u32 %v14, 7
    %s16 = smul.u32 0, 8
    %v17 = vstv %s16
    %v18 = vadd.s32 %v15, %v17
    %vm19 = vcmp.lt.s32.totalorder %v18, 8
    %vm20 = vcmask 261120
    %v21 = vsel %vm20, %v12, -inf
    %22 = vmax.xlane.f32.xlu0 %v21
    %v23 = vpop.xlane.xlu0 %22
    %v24 = vsub.f32 %v12, %v23
    %v25 = vlaneseq
    %v26 = vand.u32 %v25, 127
    %27 = vset.pattern.permute.xlu0 0
    %28 = vperm.xlu0 %27, %v13
    %v29 = vpop.permute.xlu0 %28
    %vm30 = vcmp.eq.s32.totalorder %v26, %v29
    %v31 = vsel %vm30, %v24, 0.0
    %v32 = vsel %vm20, %v31, 0.0
    %33 = vadd.xlane.f32.xlu0 %v32
    %v34 = vpop.xlane.xlu0 %33
    %v35 = vmul.f32 %v24, 1.442695
    %v36 = vpow.pop %v35
    %v37 = vsel %vm20, %v36, 0.0
    %38 = vadd.xlane.f32.xlu0 %v37
    %v39 = vpop.xlane.xlu0 %38
    %v40 = vlog2.pop %v39
    %v41 = vmul.f32 %v40, 0.6931472
    %v42 = vsub.f32 %v41, %v34
    %v43 = vsel %vm19, %v42, 0.0
    %vm44 = vcmask 7168
    %v45 = vsel %vm44, %v43, 0.0
    %46 = vadd.xlane.f32.xlu0 %v45
    %v47 = vpop.xlane.xlu0 %46
    %v48 = vrot.slane %v47, 4
    %v49 = vadd.f32 %v47, %v48
    %v50 = vrot.slane %v49, 2
    %v51 = vadd.f32 %v49, %v50
    %v52 = vrot.slane %v51, 1
    %v53 = vadd.f32 %v51, %v52
    %s54 = vtos %v53
    %s55 = scalar_lea.smem [#allocation2], 0
    %56 = sst [smem:[%s55]] %s54
    // Predicated region
    $region10: #{tpu_custom_call.1} parent=1 // pred_check
      _
    $region11: #{tpu_custom_call.1} parent=1 // pred_check_branch
      %58 = sbr.rel (0) target = $region13
    $region12: #{tpu_custom_call.1} parent=1 // pred_region
      %s60 = ssub.s32 16, 16
      %61 = vsyncadd [#allocation3], %s60
      %64 = dma.smem_to_hbm [#allocation2], 16, %s2, [#allocation3]
    $region13: #{tpu_custom_call.1} parent=1 // pred_fallthru
      _
    // Predicated region
    $region14: #{tpu_custom_call.1} parent=1 // pred_check
      _
    $region15: #{tpu_custom_call.1} parent=1 // pred_check_branch
      %66 = sbr.rel (0) target = $region17
    $region16: #{tpu_custom_call.1} parent=1 // pred_region
      %67 = dma.done [#allocation3], 16
    $region17: #{tpu_custom_call.1} parent=1 // pred_fallthru
      _
    %68 = sfence
    %69 = vsyncpa [#allocation3], 1

</llo_original>
